<compile_context>
chip_gen: v7x
topology: tpu7x:2x2x1
jax: 0.10.0
libtpu: 0.0.40
codegen_flags: <defaults>
</compile_context>

<pallas_src>
import jax
import jax.numpy as jnp
import numpy as np
from jax.experimental import pallas as pl
from jax.experimental.pallas import tpu as pltpu

BN_EPS = 1e-5   # PyTorch BatchNorm1d default eps
LANE = 128      # TPU lane width (last-dim vreg width)


def _round_up(n, m):
    return ((n + m - 1) // m) * m


def _pad_last(a, target):
    pad = target - a.shape[-1]
    if pad == 0:
        return a
    widths = [(0, 0)] * (a.ndim - 1) + [(0, pad)]
    return jnp.pad(a, widths)


def fcnet_kernel(x_ref, w1_ref, b1_ref, gamma_ref, beta_ref, w2_ref, b2_ref, o_ref):
    # Static batch size (padding of the batch axis is NOT done -- BN stats must be
    # over the real batch only).
    inv_b = jnp.float32(1.0 / x_ref.shape[0])

    # ---- Linear 1 + ReLU: bf16 MXU operands, fp32 accumulation ----
    h = jnp.dot(x_ref[...].astype(jnp.bfloat16),
                w1_ref[...].astype(jnp.bfloat16),
                preferred_element_type=jnp.float32)          # [B, Hp] fp32
    h = jnp.maximum(h + b1_ref[...], 0.0)

    # ---- BatchNorm1d (training-mode batch stats), one-pass sum / sumsq ----
    s = jnp.sum(h, axis=0, keepdims=True)                    # [1, Hp]
    ss = jnp.sum(h * h, axis=0, keepdims=True)               # [1, Hp]
    mean = s * inv_b
    var = jnp.maximum(ss * inv_b - mean * mean, 0.0)         # clamp fp32 cancellation

    # Fold BN affine into a single FMA: hn = h * scale + shift.
    # Padded hidden columns have gamma=0 -> scale=0, shift=0 -> hn=0 (harmless).
    scale = gamma_ref[...] * jax.lax.rsqrt(var + BN_EPS)     # [1, Hp]
    shift = beta_ref[...] - mean * scale                     # [1, Hp]
    hn = jnp.maximum(h * scale + shift, 0.0)                 # ReLU

    # ---- Linear 2 ----
    out = jnp.dot(hn.astype(jnp.bfloat16),
                  w2_ref[...].astype(jnp.bfloat16),
                  preferred_element_type=jnp.float32)        # [B, Op]
    o_ref[...] = (out + b2_ref[...]).astype(o_ref.dtype)


@jax.jit
def fcnet_forward(x, params):
    w1, b1, gamma, beta, w2, b2 = params
    B, F = x.shape
    H = w1.shape[1]
    O = w2.shape[1]

    # Lane-pad every feature-like dim to a multiple of 128 (zero padding keeps the
    # math exact: padded rows/cols of the weights are zero).
    Fp, Hp, Op = _round_up(F, LANE), _round_up(H, LANE), _round_up(O, LANE)
    x_p = _pad_last(x, Fp)
    w1_p = jnp.pad(w1, ((0, Fp - F), (0, Hp - H)))
    b1_p = _pad_last(b1, Hp)
    gamma_p = _pad_last(gamma, Hp)
    beta_p = _pad_last(beta, Hp)
    w2_p = jnp.pad(w2, ((0, Hp - H), (0, Op - O)))
    b2_p = _pad_last(b2, Op)

    vmem = pl.BlockSpec(memory_space=pltpu.MemorySpace.VMEM)
    out_p = pl.pallas_call(
        fcnet_kernel,
        out_shape=jax.ShapeDtypeStruct((B, Op), jnp.float32),
        in_specs=[vmem] * 7,
        out_specs=vmem,
        # Tiny footprint here; 48 MiB stays safe even on v7x's 64 MiB VMEM.
        compiler_params=pltpu.CompilerParams(vmem_limit_bytes=48 << 20),
    )(x_p, w1_p, b1_p, gamma_p, beta_p, w2_p, b2_p)

    return out_p[:, :O]   # drop the lane padding on the output


def make_params(key, n_feature, n_hidden1, n_output):
    k1, k2, k3, k4 = jax.random.split(key, 4)
    bound1 = 1.0 / np.sqrt(n_feature)
    bound2 = 1.0 / np.sqrt(n_hidden1)
    w1 = jax.random.uniform(k1, (n_feature, n_hidden1), jnp.float32, -bound1, bound1)
    b1 = jax.random.uniform(k2, (1, n_hidden1), jnp.float32, -bound1, bound1)
    gamma = jnp.ones((1, n_hidden1), jnp.float32)   # BatchNorm1d weight init
    beta = jnp.zeros((1, n_hidden1), jnp.float32)   # BatchNorm1d bias init
    w2 = jax.random.uniform(k3, (n_hidden1, n_output), jnp.float32, -bound2, bound2)
    b2 = jax.random.uniform(k4, (1, n_output), jnp.float32, -bound2, bound2)
    return (w1, b1, gamma, beta, w2, b2)


def fcnet_reference_fp32(x, params):
    # Pure fp32 reference matching the PyTorch module (BatchNorm1d in training mode).
    w1, b1, gamma, beta, w2, b2 = params
    h = jnp.maximum(x @ w1 + b1, 0.0)
    mean = jnp.mean(h, axis=0, keepdims=True)
    var = jnp.mean((h - mean) ** 2, axis=0, keepdims=True)
    hn = jnp.maximum((h - mean) / jnp.sqrt(var + BN_EPS) * gamma + beta, 0.0)
    return hn @ w2 + b2


def fcnet_reference_bf16mxu(x, params):
    # Reference mirroring the kernel's precision choice: bf16 matmul operands,
    # fp32 accumulation and fp32 BN/ReLU math.
    w1, b1, gamma, beta, w2, b2 = params
    h = jnp.dot(x.astype(jnp.bfloat16), w1.astype(jnp.bfloat16),
                preferred_element_type=jnp.float32)
    h = jnp.maximum(h + b1, 0.0)
    mean = jnp.mean(h, axis=0, keepdims=True)
    var = jnp.mean((h - mean) ** 2, axis=0, keepdims=True)
    hn = jnp.maximum((h - mean) * jax.lax.rsqrt(var + BN_EPS) * gamma + beta, 0.0)
    out = jnp.dot(hn.astype(jnp.bfloat16), w2.astype(jnp.bfloat16),
                  preferred_element_type=jnp.float32)
    return out + b2


if __name__ == "__main__":
    # TODO(synk): BatchNorm1d running-mean/var update (eval-mode path) is module
    # state, not part of this forward pass, and is not implemented in the kernel.
    B, n_feature, n_hidden1, n_output = 8, 32, 64, 16
    key = jax.random.PRNGKey(0)
    kx, kp = jax.random.split(key)
    x = jax.random.normal(kx, (B, n_feature), jnp.float32)
    params = make_params(kp, n_feature, n_hidden1, n_output)

    out = fcnet_forward(x, params)
    out = jax.block_until_ready(out)

    # Tight check against a precision-matched reference (validates the kernel math).
    ref_bf16 = fcnet_reference_bf16mxu(x, params)
    np.testing.assert_allclose(np.asarray(out), np.asarray(ref_bf16),
                               rtol=1e-3, atol=1e-3)
    # Looser sanity check against the pure-fp32 PyTorch-equivalent semantics
    # (bf16 MXU operands trade a little accuracy for throughput).
    ref_f32 = fcnet_reference_fp32(x, params)
    np.testing.assert_allclose(np.asarray(out), np.asarray(ref_f32),
                               rtol=5e-2, atol=5e-2)
    print("KERNEL_OK")
</pallas_src>

<mosaic_0001>
module attributes {stable_mosaic.version = 11 : i64} {
  func.func @fcnet_kernel(%arg0: memref<8x128xf32, #tpu.memory_space<vmem>>, %arg1: memref<128x128xf32, #tpu.memory_space<vmem>>, %arg2: memref<1x128xf32, #tpu.memory_space<vmem>>, %arg3: memref<1x128xf32, #tpu.memory_space<vmem>>, %arg4: memref<1x128xf32, #tpu.memory_space<vmem>>, %arg5: memref<128x128xf32, #tpu.memory_space<vmem>>, %arg6: memref<1x128xf32, #tpu.memory_space<vmem>>, %arg7: memref<8x128xf32, #tpu.memory_space<vmem>>) attributes {dimension_semantics = [], scalar_prefetch = 0 : i64, scratch_operands = 0 : i64, tpu.core_type = #tpu.core_type<tc>} {
    %c0 = arith.constant 0 : index
    %c0_0 = arith.constant 0 : index
    %0 = vector.load %arg0[%c0, %c0_0] : memref<8x128xf32, #tpu.memory_space<vmem>>, vector<8x128xf32>
    %1 = arith.truncf %0 : vector<8x128xf32> to vector<8x128xbf16>
    %c0_1 = arith.constant 0 : index
    %c0_2 = arith.constant 0 : index
    %2 = vector.load %arg1[%c0_1, %c0_2] : memref<128x128xf32, #tpu.memory_space<vmem>>, vector<128x128xf32>
    %3 = arith.truncf %2 : vector<128x128xf32> to vector<128x128xbf16>
    %cst = arith.constant dense<0.000000e+00> : vector<8x128xf32>
    %4 = tpu.matmul %1, %3, %cst {dimension_numbers = #tpu.dot_dimension_numbers<[1], [0], [0], [1], [0, 0, 1, 1], [], []>} : vector<8x128xbf16>, vector<128x128xbf16>, vector<8x128xf32> -> vector<8x128xf32>
    %c0_3 = arith.constant 0 : index
    %c0_4 = arith.constant 0 : index
    %5 = vector.load %arg2[%c0_3, %c0_4] : memref<1x128xf32, #tpu.memory_space<vmem>>, vector<1x128xf32>
    %6 = vector.broadcast %5 : vector<1x128xf32> to vector<8x128xf32>
    %7 = arith.addf %4, %6 : vector<8x128xf32>
    %cst_5 = arith.constant 0.000000e+00 : f32
    %8 = vector.broadcast %cst_5 : f32 to vector<8x128xf32>
    %9 = arith.maximumf %7, %8 : vector<8x128xf32>
    %cst_6 = arith.constant dense<0.000000e+00> : vector<128xf32>
    %10 = vector.multi_reduction <add>, %9, %cst_6 [0] : vector<8x128xf32> to vector<128xf32>
    %11 = vector.shape_cast %10 : vector<128xf32> to vector<1x128xf32>
    %12 = arith.mulf %9, %9 : vector<8x128xf32>
    %cst_7 = arith.constant dense<0.000000e+00> : vector<128xf32>
    %13 = vector.multi_reduction <add>, %12, %cst_7 [0] : vector<8x128xf32> to vector<128xf32>
    %14 = vector.shape_cast %13 : vector<128xf32> to vector<1x128xf32>
    %cst_8 = arith.constant 1.250000e-01 : f32
    %15 = vector.broadcast %cst_8 : f32 to vector<1x128xf32>
    %16 = arith.mulf %11, %15 : vector<1x128xf32>
    %cst_9 = arith.constant 1.250000e-01 : f32
    %17 = vector.broadcast %cst_9 : f32 to vector<1x128xf32>
    %18 = arith.mulf %14, %17 : vector<1x128xf32>
    %19 = arith.mulf %16, %16 : vector<1x128xf32>
    %20 = arith.subf %18, %19 : vector<1x128xf32>
    %cst_10 = arith.constant 0.000000e+00 : f32
    %21 = vector.broadcast %cst_10 : f32 to vector<1x128xf32>
    %22 = arith.maximumf %20, %21 : vector<1x128xf32>
    %c0_11 = arith.constant 0 : index
    %c0_12 = arith.constant 0 : index
    %23 = vector.load %arg3[%c0_11, %c0_12] : memref<1x128xf32, #tpu.memory_space<vmem>>, vector<1x128xf32>
    %cst_13 = arith.constant 9.99999974E-6 : f32
    %24 = vector.broadcast %cst_13 : f32 to vector<1x128xf32>
    %25 = arith.addf %22, %24 : vector<1x128xf32>
    %26 = math.rsqrt %25 : vector<1x128xf32>
    %27 = arith.mulf %23, %26 : vector<1x128xf32>
    %c0_14 = arith.constant 0 : index
    %c0_15 = arith.constant 0 : index
    %28 = vector.load %arg4[%c0_14, %c0_15] : memref<1x128xf32, #tpu.memory_space<vmem>>, vector<1x128xf32>
    %29 = arith.mulf %16, %27 : vector<1x128xf32>
    %30 = arith.subf %28, %29 : vector<1x128xf32>
    %31 = vector.broadcast %27 : vector<1x128xf32> to vector<8x128xf32>
    %32 = arith.mulf %9, %31 : vector<8x128xf32>
    %33 = vector.broadcast %30 : vector<1x128xf32> to vector<8x128xf32>
    %34 = arith.addf %32, %33 : vector<8x128xf32>
    %cst_16 = arith.constant 0.000000e+00 : f32
    %35 = vector.broadcast %cst_16 : f32 to vector<8x128xf32>
    %36 = arith.maximumf %34, %35 : vector<8x128xf32>
    %37 = arith.truncf %36 : vector<8x128xf32> to vector<8x128xbf16>
    %c0_17 = arith.constant 0 : index
    %c0_18 = arith.constant 0 : index
    %38 = vector.load %arg5[%c0_17, %c0_18] : memref<128x128xf32, #tpu.memory_space<vmem>>, vector<128x128xf32>
    %39 = arith.truncf %38 : vector<128x128xf32> to vector<128x128xbf16>
    %cst_19 = arith.constant dense<0.000000e+00> : vector<8x128xf32>
    %40 = tpu.matmul %37, %39, %cst_19 {dimension_numbers = #tpu.dot_dimension_numbers<[1], [0], [0], [1], [0, 0, 1, 1], [], []>} : vector<8x128xbf16>, vector<128x128xbf16>, vector<8x128xf32> -> vector<8x128xf32>
    %c0_20 = arith.constant 0 : index
    %c0_21 = arith.constant 0 : index
    %41 = vector.load %arg6[%c0_20, %c0_21] : memref<1x128xf32, #tpu.memory_space<vmem>>, vector<1x128xf32>
    %42 = vector.broadcast %41 : vector<1x128xf32> to vector<8x128xf32>
    %43 = arith.addf %40, %42 : vector<8x128xf32>
    %c0_22 = arith.constant 0 : index
    %c0_23 = arith.constant 0 : index
    %44 = vector.load %arg7[%c0_22, %c0_23] : memref<8x128xf32, #tpu.memory_space<vmem>>, vector<8x128xf32>
    tpu.vector_store %arg7[%c0_22, %c0_23], %43 {strides = array<i32>} : memref<8x128xf32, #tpu.memory_space<vmem>>, vector<8x128xf32>,
    return
  }
}

</mosaic_0001>

<llo_original>
// kernel: fcnet_forward.1
$region0: #{fcnet_forward.1}
  #allocation0 [shape = 'u32[]', space=smem, size = 0x4, offset = 0x4, fixed_abs, tag = 'smem constant byte address 0x4 - core index']
  #allocation1 [shape = 'u32[144,128]{1,0:T(1,128)}', space=vmem, size = 0x12000, scoped, tag = 'internal scratch']
  %s0 = inlined_call_operand.vmem [shape: f32[8,128], index: 0, kind: input, shape index: {}]
  %s1 = inlined_call_operand.vmem [shape: f32[128,128], index: 1, kind: input, shape index: {}]
  %s2 = inlined_call_operand.vmem [shape: f32[1,128], index: 2, kind: input, shape index: {}]
  %s3 = inlined_call_operand.vmem [shape: f32[1,128], index: 3, kind: input, shape index: {}]
  %s4 = inlined_call_operand.vmem [shape: f32[1,128], index: 4, kind: input, shape index: {}]
  %s5 = inlined_call_operand.vmem [shape: f32[128,128], index: 5, kind: input, shape index: {}]
  %s6 = inlined_call_operand.vmem [shape: f32[1,128], index: 6, kind: input, shape index: {}]
  %s7 = inlined_call_operand.hbm [shape: f32[8,128], index: 7, kind: output, shape index: {}]
  %s8 = sld [smem:[#allocation0]]
  $region38: #{fcnet_forward.1} parent=0
    _
  %s10 = ssub.s32 1, %s8
  %s11 = scalar_select 0, %s10, %s8
  $region1: #{fcnet_forward.1} parent=0
    #allocation2 [shape = 'u8[4096]{0}', space=vmem, size = 0x1000, scoped, tag = 'output window, operand 0, single buffered']
    #allocation3 [shape = 's32[1]{0}', space=sflag, size = 0x4, scoped, tag = 'scoped memory for fcnet_forward.1']
    %12 = vsyncpa [#allocation3], 0
    // Predicated region
    $region2: #{fcnet_forward.1} parent=1 // pred_check
      _
    $region3: #{fcnet_forward.1} parent=1 // pred_check_branch
      %14 = sbr.rel (0) target = $region5
    $region4: #{fcnet_forward.1} parent=1 // pred_region
      _
    $region5: #{fcnet_forward.1} parent=1 // pred_fallthru
      _
    // Predicated region
    $region6: #{fcnet_forward.1} parent=1 // pred_check
      _
    $region7: #{fcnet_forward.1} parent=1 // pred_check_branch
      %16 = sbr.rel (0) target = $region9
    $region8: #{fcnet_forward.1} parent=1 // pred_region
      _
    $region9: #{fcnet_forward.1} parent=1 // pred_fallthru
      _
    // Predicated region
    $region10: #{fcnet_forward.1} parent=1 // pred_check
      _
    $region11: #{fcnet_forward.1} parent=1 // pred_check_branch
      %18 = sbr.rel (0) target = $region13
    $region12: #{fcnet_forward.1} parent=1 // pred_region
      _
    $region13: #{fcnet_forward.1} parent=1 // pred_fallthru
      _
    // Predicated region
    $region14: #{fcnet_forward.1} parent=1 // pred_check
      _
    $region15: #{fcnet_forward.1} parent=1 // pred_check_branch
      %20 = sbr.rel (0) target = $region17
    $region16: #{fcnet_forward.1} parent=1 // pred_region
      _
    $region17: #{fcnet_forward.1} parent=1 // pred_fallthru
      _
    // Predicated region
    $region18: #{fcnet_forward.1} parent=1 // pred_check
      _
    $region19: #{fcnet_forward.1} parent=1 // pred_check_branch
      %22 = sbr.rel (0) target = $region21
    $region20: #{fcnet_forward.1} parent=1 // pred_region
      _
    $region21: #{fcnet_forward.1} parent=1 // pred_fallthru
      _
    // Predicated region
    $region22: #{fcnet_forward.1} parent=1 // pred_check
      _
    $region23: #{fcnet_forward.1} parent=1 // pred_check_branch
      %24 = sbr.rel (0) target = $region25
    $region24: #{fcnet_forward.1} parent=1 // pred_region
      _
    $region25: #{fcnet_forward.1} parent=1 // pred_fallthru
      _
    // Predicated region
    $region26: #{fcnet_forward.1} parent=1 // pred_check
      _
    $region27: #{fcnet_forward.1} parent=1 // pred_check_branch
      %26 = sbr.rel (0) target = $region29
    $region28: #{fcnet_forward.1} parent=1 // pred_region
      _
    $region29: #{fcnet_forward.1} parent=1 // pred_fallthru
      _
    %v28 = vld [vmem:[%s0] sm:$0xff]
    %v29 = vpack.c.bf16 %v28, %v28
    %v30 = vld [vmem:[%s1] sm:$0xff]
    %v31 = vld [vmem:[%s1 + $0x8] sm:$0xff]
    %v32 = vld [vmem:[%s1 + $0x10] sm:$0xff]
    %v33 = vld [vmem:[%s1 + $0x18] sm:$0xff]
    %v34 = vld [vmem:[%s1 + $0x20] sm:$0xff]
    %v35 = vld [vmem:[%s1 + $0x28] sm:$0xff]
    %v36 = vld [vmem:[%s1 + $0x30] sm:$0xff]
    %v37 = vld [vmem:[%s1 + $0x38] sm:$0xff]
    %v38 = vld [vmem:[%s1 + $0x40] sm:$0xff]
    %v39 = vld [vmem:[%s1 + $0x48] sm:$0xff]
    %v40 = vld [vmem:[%s1 + $0x50] sm:$0xff]
    %v41 = vld [vmem:[%s1 + $0x58] sm:$0xff]
    %v42 = vld [vmem:[%s1 + $0x60] sm:$0xff]
    %v43 = vld [vmem:[%s1 + $0x68] sm:$0xff]
    %v44 = vld [vmem:[%s1 + $0x70] sm:$0xff]
    %v45 = vld [vmem:[%s1 + $0x78] sm:$0xff]
    %v46 = vpack.c.bf16 %v31, %v30
    %v47 = vpack.c.bf16 %v33, %v32
    %v48 = vpack.c.bf16 %v35, %v34
    %v49 = vpack.c.bf16 %v37, %v36
    %v50 = vpack.c.bf16 %v39, %v38
    %v51 = vpack.c.bf16 %v41, %v40
    %v52 = vpack.c.bf16 %v43, %v42
    %v53 = vpack.c.bf16 %v45, %v44
    %v54 = vld [vmem:[%s2] sm:$0x1]
    %v56 = vlaneseq
    %v57 = vshrl.u32 %v56, 7
    %v58 = vsub.s32 0, %v57
    %v59 = vrot.slane %v54, %v58
    %61 = vmatprep.subr.bf16.mxu0 0
    %62 = vmatpush1.bf16.msra.mxu0 %v46
    %63 = vmatprep.subr.bf16.mxu0 0
    %64 = vmatpush1.bf16.msra.mxu0 %v47
    %65 = vmatprep.subr.bf16.mxu0 0
    %66 = vmatpush1.bf16.msra.mxu0 %v48
    %67 = vmatprep.subr.bf16.mxu0 0
    %68 = vmatpush1.bf16.msra.mxu0 %v49
    %69 = vmatprep.subr.bf16.mxu0 0
    %70 = vmatpush1.bf16.msra.mxu0 %v50
    %71 = vmatprep.subr.bf16.mxu0 0
    %72 = vmatpush1.bf16.msra.mxu0 %v51
    %73 = vmatprep.subr.bf16.mxu0 0
    %74 = vmatpush1.bf16.msra.mxu0 %v52
    %75 = vmatprep.subr.bf16.mxu0 0
    %76 = vmatpush1.bf16.msra.mxu0 %v53
    %77 = vmatprep.subr.bf16.mxu0 0
    %78 = vmatpush1.bf16.msra.mxu0 0
    %79 = vmatprep.subr.bf16.mxu0 0
    %80 = vmatpush1.bf16.msra.mxu0 0
    %81 = vmatprep.subr.bf16.mxu0 0
    %82 = vmatpush1.bf16.msra.mxu0 0
    %83 = vmatprep.subr.bf16.mxu0 0
    %84 = vmatpush1.bf16.msra.mxu0 0
    %85 = vmatprep.subr.bf16.mxu0 0
    %86 = vmatpush1.bf16.msra.mxu0 0
    %87 = vmatprep.subr.bf16.mxu0 0
    %88 = vmatpush1.bf16.msra.mxu0 0
    %89 = vmatprep.subr.bf16.mxu0 0
    %90 = vmatpush1.bf16.msra.mxu0 0
    %91 = vmatprep.subr.bf16.mxu0 0
    %92 = vmatpush1.bf16.msra.mxu0 0
    %93 = vmatprep.mubr.bf16.mxu0 0
    %94 = vmatmul.mubr.bf16.gmra.mrb[0].mxu0 %v29
    %v95 = vpop.f32.mrb[0].mxu0
    %v96 = vadd.f32 %v59, %v95
    %v97 = vpop.f32.mrb[0].mxu0
    %v98 = vpop.f32.mrb[0].mxu0
    %v99 = vpop.f32.mrb[0].mxu0
    %100 = vdwg.mxu0
    %v101 = vmax.f32 %v96, 0.0
    %v102 = vrot.slane %v101, 4
    %v103 = vadd.f32 %v101, %v102
    %v104 = vrot.slane %v103, 2
    %v105 = vadd.f32 %v103, %v104
    %v106 = vrot.slane %v105, 1
    %v107 = vadd.f32 %v105, %v106
    %v108 = vmul.f32 %v101, %v101
    %v109 = vrot.slane %v108, 4
    %v110 = vadd.f32 %v108, %v109
    %v111 = vrot.slane %v110, 2
    %v112 = vadd.f32 %v110, %v111
    %v113 = vrot.slane %v112, 1
    %v114 = vadd.f32 %v112, %v113
    %v115 = vmul.f32 %v107, 0.125
    %v116 = vmul.f32 %v114, 0.125
    %v117 = vmul.f32 %v115, %v115
    %v118 = vsub.f32 %v116, %v117
    %v119 = vmax.f32 %v118, 0.0
    %v120 = vld [vmem:[%s3] sm:$0x1]
    %v121 = vadd.f32 %v119, 1e-05
    %v122 = vrsqrt.pop %v121
    %v123 = vmul.f32 %v120, %v122
    %v124 = vld [vmem:[%s4] sm:$0x1]
    %v125 = vmul.f32 %v115, %v123
    %v126 = vsub.f32 %v124, %v125
    %v128 = vlaneseq
    %v129 = vshrl.u32 %v128, 7
    %v130 = vsub.s32 0, %v129
    %v131 = vrot.slane %v123, %v130
    %v133 = vmul.f32 %v101, %v131
    %v135 = vlaneseq
    %v136 = vshrl.u32 %v135, 7
    %v137 = vsub.s32 0, %v136
    %v138 = vrot.slane %v126, %v137
    %v140 = vadd.f32 %v133, %v138
    %v141 = vmax.f32 %v140, 0.0
    %v142 = vpack.c.bf16 %v141, %v141
    %v143 = vld [vmem:[%s5] sm:$0xff]
    %v144 = vld [vmem:[%s5 + $0x8] sm:$0xff]
    %v145 = vld [vmem:[%s5 + $0x10] sm:$0xff]
    %v146 = vld [vmem:[%s5 + $0x18] sm:$0xff]
    %v147 = vld [vmem:[%s5 + $0x20] sm:$0xff]
    %v148 = vld [vmem:[%s5 + $0x28] sm:$0xff]
    %v149 = vld [vmem:[%s5 + $0x30] sm:$0xff]
    %v150 = vld [vmem:[%s5 + $0x38] sm:$0xff]
    %v151 = vld [vmem:[%s5 + $0x40] sm:$0xff]
    %v152 = vld [vmem:[%s5 + $0x48] sm:$0xff]
    %v153 = vld [vmem:[%s5 + $0x50] sm:$0xff]
    %v154 = vld [vmem:[%s5 + $0x58] sm:$0xff]
    %v155 = vld [vmem:[%s5 + $0x60] sm:$0xff]
    %v156 = vld [vmem:[%s5 + $0x68] sm:$0xff]
    %v157 = vld [vmem:[%s5 + $0x70] sm:$0xff]
    %v158 = vld [vmem:[%s5 + $0x78] sm:$0xff]
    %v159 = vpack.c.bf16 %v144, %v143
    %v160 = vpack.c.bf16 %v146, %v145
    %v161 = vpack.c.bf16 %v148, %v147
    %v162 = vpack.c.bf16 %v150, %v149
    %v163 = vpack.c.bf16 %v152, %v151
    %v164 = vpack.c.bf16 %v154, %v153
    %v165 = vpack.c.bf16 %v156, %v155
    %v166 = vpack.c.bf16 %v158, %v157
    %v167 = vld [vmem:[%s6] sm:$0x1]
    %v169 = vlaneseq
    %v170 = vshrl.u32 %v169, 7
    %v171 = vsub.s32 0, %v170
    %v172 = vrot.slane %v167, %v171
    %174 = vmatprep.subr.bf16.mxu0 0
    %175 = vmatpush1.bf16.msra.mxu0 %v159
    %176 = vmatprep.subr.bf16.mxu0 0
    %177 = vmatpush1.bf16.msra.mxu0 %v160
    %178 = vmatprep.subr.bf16.mxu0 0
    %179 = vmatpush1.bf16.msra.mxu0 %v161
    %180 = vmatprep.subr.bf16.mxu0 0
    %181 = vmatpush1.bf16.msra.mxu0 %v162
    %182 = vmatprep.subr.bf16.mxu0 0
    %183 = vmatpush1.bf16.msra.mxu0 %v163
    %184 = vmatprep.subr.bf16.mxu0 0
    %185 = vmatpush1.bf16.msra.mxu0 %v164
    %186 = vmatprep.subr.bf16.mxu0 0
    %187 = vmatpush1.bf16.msra.mxu0 %v165
    %188 = vmatprep.subr.bf16.mxu0 0
    %189 = vmatpush1.bf16.msra.mxu0 %v166
    %190 = vmatprep.subr.bf16.mxu0 0
    %191 = vmatpush1.bf16.msra.mxu0 0
    %192 = vmatprep.subr.bf16.mxu0 0
    %193 = vmatpush1.bf16.msra.mxu0 0
    %194 = vmatprep.subr.bf16.mxu0 0
    %195 = vmatpush1.bf16.msra.mxu0 0
    %196 = vmatprep.subr.bf16.mxu0 0
    %197 = vmatpush1.bf16.msra.mxu0 0
    %198 = vmatprep.subr.bf16.mxu0 0
    %199 = vmatpush1.bf16.msra.mxu0 0
    %200 = vmatprep.subr.bf16.mxu0 0
    %201 = vmatpush1.bf16.msra.mxu0 0
    %202 = vmatprep.subr.bf16.mxu0 0
    %203 = vmatpush1.bf16.msra.mxu0 0
    %204 = vmatprep.subr.bf16.mxu0 0
    %205 = vmatpush1.bf16.msra.mxu0 0
    %206 = vmatprep.mubr.bf16.mxu0 0
    %207 = vmatmul.mubr.bf16.gmra.mrb[0].mxu0 %v142
    %v208 = vpop.f32.mrb[0].mxu0
    %v209 = vadd.f32 %v172, %v208
    %v210 = vpop.f32.mrb[0].mxu0
    %v211 = vpop.f32.mrb[0].mxu0
    %v212 = vpop.f32.mrb[0].mxu0
    %213 = vdwg.mxu0
    %214 = vst [vmem:[#allocation2] sm:$0xff] %v209
    // Predicated region
    $region30: #{fcnet_forward.1} parent=1 // pred_check
      _
    $region31: #{fcnet_forward.1} parent=1 // pred_check_branch
      %216 = sbr.rel (0) target = $region33
    $region32: #{fcnet_forward.1} parent=1 // pred_region
      %s218 = ssub.s32 128, 128
      %219 = vsyncadd [#allocation3], %s218
      %s221 = sshll.u32 [#allocation2], 4
      %s222 = int_to_ptr.vmem [resolvable:$true] %s221
      %224 = dma.vmem_to_hbm [thread:$0]  %s222, 128, %s7, [#allocation3]
    $region33: #{fcnet_forward.1} parent=1 // pred_fallthru
      _
    // Predicated region
    $region34: #{fcnet_forward.1} parent=1 // pred_check
      _
    $region35: #{fcnet_forward.1} parent=1 // pred_check_branch
      %226 = sbr.rel (0) target = $region37
    $region36: #{fcnet_forward.1} parent=1 // pred_region
      %227 = dma.done [#allocation3], 128
    $region37: #{fcnet_forward.1} parent=1 // pred_fallthru
      _
    %228 = vsyncpa [#allocation3], 1

</llo_original>
